<compile_context>
chip_gen: v7x
topology: tpu7x:2x2x1
jax: 0.10.0
libtpu: 0.0.40
codegen_flags: <defaults>
</compile_context>

<pallas_src>
import jax
import jax.numpy as jnp
from jax.experimental import pallas as pl
from jax.experimental.pallas import tpu as pltpu

LANE = 128


def _round_up(a, m):
    return (a + m - 1) // m * m


def mlp_kernel(x_ref,
               w1_ref, b1_ref,
               w2_ref, b2_ref,
               w3_ref, b3_ref,
               w4_ref, b4_ref,
               w6_ref, b6_ref,
               o_ref):
    # One batch tile per grid step; all weights/biases fully VMEM-resident.
    bf16 = jnp.bfloat16
    h = x_ref[...].astype(bf16)

    h = jnp.dot(h, w1_ref[...], preferred_element_type=jnp.float32) + b1_ref[...]
    h = jnp.maximum(h, 0.0).astype(bf16)                      # relu

    h = jnp.dot(h, w2_ref[...], preferred_element_type=jnp.float32) + b2_ref[...]
    h = jnp.maximum(h, 0.0).astype(bf16)                      # relu
    # TODO(synk): dropout1 (p=0.25) is identity in eval mode; training-mode masking
    # (pltpu.prng_seed/prng_random_bits + 1/(1-p) scaling) not implemented.

    h = jnp.dot(h, w3_ref[...], preferred_element_type=jnp.float32) + b3_ref[...]
    h = jnp.maximum(h, 0.0).astype(bf16)                      # relu
    # dropout1 again -> identity (eval)

    h = jnp.dot(h, w4_ref[...], preferred_element_type=jnp.float32) + b4_ref[...]
    h = jnp.maximum(h, 0.0).astype(bf16)                      # relu
    # dropout2 (p=0.5) -> identity (eval)

    out = jnp.dot(h, w6_ref[...], preferred_element_type=jnp.float32) + b6_ref[...]
    o_ref[...] = out.astype(o_ref.dtype)                      # lane-dense (128-wide) store


def prepare_params(params):
    """One-time prep (outside the hot path): cast weights to bf16 and zero-pad every
    layer's output dim up to a multiple of 128 lanes (exact: extra columns/rows are 0)."""
    bf16 = jnp.bfloat16
    prepped = {}
    pad_in = params["w1"].shape[0]          # input feature dim stays unpadded (full-dim block)
    for name in ["1", "2", "3", "4", "6"]:
        w = params[f"w{name}"]
        b = params[f"b{name}"]
        fi, fo = w.shape
        pad_out = _round_up(max(fo, LANE), LANE)
        prepped[f"w{name}"] = jnp.pad(w, ((0, pad_in - fi), (0, pad_out - fo))).astype(bf16)
        prepped[f"b{name}"] = jnp.pad(b, ((0, 0), (0, pad_out - fo)))
        pad_in = pad_out
    return prepped


def neural_net_forward(x, prepared, num_classes, *, tb=1024, out_dtype=jnp.float32):
    """x: [B, input_size] f32. prepared: output of prepare_params (bf16, lane-padded)."""
    B, F = x.shape
    ncp = prepared["w6"].shape[1]

    # Big tiles amortize the ~0.35us per-grid-step overhead; cap so the "parallel" batch
    # axis has >=2 steps when possible (v7x megacore); multiple of 8 f32 sublanes.
    tb = max(8, min(_round_up(tb, 8), _round_up(pl.cdiv(B, 2), 8)))
    grid = (pl.cdiv(B, tb),)

    operands = (
        x,
        prepared["w1"], prepared["b1"],
        prepared["w2"], prepared["b2"],
        prepared["w3"], prepared["b3"],
        prepared["w4"], prepared["b4"],
        prepared["w6"], prepared["b6"],
    )

    def resident_spec(arr):
        # Whole array, constant block index across the batch grid -> stays in VMEM, no re-DMA.
        return pl.BlockSpec(arr.shape, lambda i: (0, 0))

    in_specs = [pl.BlockSpec((tb, F), lambda i: (i, 0))]           # x tile streams over batch
    in_specs += [resident_spec(op) for op in operands[1:]]         # weights/biases VMEM-resident
    out_spec = pl.BlockSpec((tb, ncp), lambda i: (i, 0))           # lane-dense output tile
    # NOTE: if an xprof trace shows exposed DMA on the x/out streams, add
    # pipeline_mode=pl.Buffered(3) to in_specs[0] and out_spec (tiles are tiny).

    out_padded = pl.pallas_call(
        mlp_kernel,
        out_shape=jax.ShapeDtypeStruct((B, ncp), out_dtype),
        grid=grid,
        in_specs=in_specs,
        out_specs=out_spec,
        compiler_params=pltpu.CompilerParams(
            dimension_semantics=("parallel",),
        ),
    )(*operands)

    return out_padded[:, :num_classes]


def init_params(key, input_size, hidden_size, num_classes):
    """PyTorch nn.Linear default init (U(-1/sqrt(fan_in), +1/sqrt(fan_in))).
    Weights stored transposed as [in, out]; biases as [1, out]."""
    dims = [
        (input_size, hidden_size),                      # l1
        (hidden_size, hidden_size // 2),                # l2
        (hidden_size // 2, hidden_size // 4),           # l3
        (hidden_size // 4, hidden_size // 8),           # l4
        (hidden_size // 8, num_classes),                # l6
    ]
    names = ["1", "2", "3", "4", "6"]
    params = {}
    for name, (fan_in, fan_out) in zip(names, dims):
        key, kw, kb = jax.random.split(key, 3)
        bound = 1.0 / jnp.sqrt(jnp.float32(fan_in))
        params[f"w{name}"] = jax.random.uniform(
            kw, (fan_in, fan_out), dtype=jnp.float32, minval=-bound, maxval=bound)
        params[f"b{name}"] = jax.random.uniform(
            kb, (1, fan_out), dtype=jnp.float32, minval=-bound, maxval=bound)
    return params


def reference_forward(x, params):
    """Pure-JAX reference matching the kernel's bf16-matmul / f32-accumulate numerics
    (zero lane-padding inside the kernel is mathematically exact, so unpadded params match)."""
    bf16 = jnp.bfloat16

    def lin(h, w, b):
        return jnp.dot(h.astype(bf16), w.astype(bf16),
                       preferred_element_type=jnp.float32) + b

    h = jnp.maximum(lin(x, params["w1"], params["b1"]), 0.0)
    h = jnp.maximum(lin(h, params["w2"], params["b2"]), 0.0)
    h = jnp.maximum(lin(h, params["w3"], params["b3"]), 0.0)
    h = jnp.maximum(lin(h, params["w4"], params["b4"]), 0.0)
    return lin(h, params["w6"], params["b6"])


if __name__ == "__main__":
    input_size, hidden_size, num_classes = 64, 64, 10
    batch = 20  # not a multiple of the tile -> exercises the ragged last grid step

    key = jax.random.PRNGKey(0)
    key, kx = jax.random.split(key)
    x = jax.random.normal(kx, (batch, input_size), dtype=jnp.float32)
    params = init_params(key, input_size, hidden_size, num_classes)

    prepared = prepare_params(params)   # one-time bf16 cast + lane padding (not in hot path)

    out = neural_net_forward(x, prepared, num_classes)
    out = jax.block_until_ready(out)

    ref = reference_forward(x, params)
    assert out.shape == (batch, num_classes)
    assert jnp.allclose(out, ref, atol=1e-2, rtol=1e-2), "mismatch vs JAX reference"

    print("KERNEL_OK")
</pallas_src>

<mosaic_0001>
module attributes {stable_mosaic.version = 11 : i64} {
  func.func @mlp_kernel(%arg0: i32, %arg1: memref<16x64xf32, #tpu.memory_space<vmem>>, %arg2: memref<64x128xbf16, #tpu.memory_space<vmem>>, %arg3: memref<1x128xf32, #tpu.memory_space<vmem>>, %arg4: memref<128x128xbf16, #tpu.memory_space<vmem>>, %arg5: memref<1x128xf32, #tpu.memory_space<vmem>>, %arg6: memref<128x128xbf16, #tpu.memory_space<vmem>>, %arg7: memref<1x128xf32, #tpu.memory_space<vmem>>, %arg8: memref<128x128xbf16, #tpu.memory_space<vmem>>, %arg9: memref<1x128xf32, #tpu.memory_space<vmem>>, %arg10: memref<128x128xbf16, #tpu.memory_space<vmem>>, %arg11: memref<1x128xf32, #tpu.memory_space<vmem>>, %arg12: memref<16x128xf32, #tpu.memory_space<vmem>>) attributes {dimension_semantics = [#tpu.dimension_semantics<parallel>], iteration_bounds = array<i64: 2>, scalar_prefetch = 0 : i64, scratch_operands = 0 : i64, tpu.core_type = #tpu.core_type<tc>, window_params = [{transform_indices = @transform_0, window_bounds = array<i64: 16, 64>}, {pipeline_mode = #tpu.pipeline_mode<synchronous>, transform_indices = @transform_1, window_bounds = array<i64: 64, 128>}, {pipeline_mode = #tpu.pipeline_mode<synchronous>, transform_indices = @transform_2, window_bounds = array<i64: 1, 128>}, {pipeline_mode = #tpu.pipeline_mode<synchronous>, transform_indices = @transform_3, window_bounds = array<i64: 128, 128>}, {pipeline_mode = #tpu.pipeline_mode<synchronous>, transform_indices = @transform_4, window_bounds = array<i64: 1, 128>}, {pipeline_mode = #tpu.pipeline_mode<synchronous>, transform_indices = @transform_5, window_bounds = array<i64: 128, 128>}, {pipeline_mode = #tpu.pipeline_mode<synchronous>, transform_indices = @transform_6, window_bounds = array<i64: 1, 128>}, {pipeline_mode = #tpu.pipeline_mode<synchronous>, transform_indices = @transform_7, window_bounds = array<i64: 128, 128>}, {pipeline_mode = #tpu.pipeline_mode<synchronous>, transform_indices = @transform_8, window_bounds = array<i64: 1, 128>}, {pipeline_mode = #tpu.pipeline_mode<synchronous>, transform_indices = @transform_9, window_bounds = array<i64: 128, 128>}, {pipeline_mode = #tpu.pipeline_mode<synchronous>, transform_indices = @transform_10, window_bounds = array<i64: 1, 128>}, {transform_indices = @transform_11, window_bounds = array<i64: 16, 128>}]} {
    %c0 = arith.constant 0 : index
    %c0_0 = arith.constant 0 : index
    %0 = vector.load %arg1[%c0, %c0_0] : memref<16x64xf32, #tpu.memory_space<vmem>>, vector<16x64xf32>
    %1 = arith.truncf %0 : vector<16x64xf32> to vector<16x64xbf16>
    %c0_1 = arith.constant 0 : index
    %c0_2 = arith.constant 0 : index
    %2 = vector.load %arg2[%c0_1, %c0_2] : memref<64x128xbf16, #tpu.memory_space<vmem>>, vector<64x128xbf16>
    %cst = arith.constant dense<0.000000e+00> : vector<16x128xf32>
    %3 = tpu.matmul %1, %2, %cst {dimension_numbers = #tpu.dot_dimension_numbers<[1], [0], [0], [1], [0, 0, 1, 1], [], []>} : vector<16x64xbf16>, vector<64x128xbf16>, vector<16x128xf32> -> vector<16x128xf32>
    %c0_3 = arith.constant 0 : index
    %c0_4 = arith.constant 0 : index
    %4 = vector.load %arg3[%c0_3, %c0_4] : memref<1x128xf32, #tpu.memory_space<vmem>>, vector<1x128xf32>
    %5 = vector.broadcast %4 : vector<1x128xf32> to vector<16x128xf32>
    %6 = arith.addf %3, %5 : vector<16x128xf32>
    %cst_5 = arith.constant 0.000000e+00 : f32
    %7 = vector.broadcast %cst_5 : f32 to vector<16x128xf32>
    %8 = arith.maximumf %6, %7 : vector<16x128xf32>
    %9 = arith.truncf %8 : vector<16x128xf32> to vector<16x128xbf16>
    %c0_6 = arith.constant 0 : index
    %c0_7 = arith.constant 0 : index
    %10 = vector.load %arg4[%c0_6, %c0_7] : memref<128x128xbf16, #tpu.memory_space<vmem>>, vector<128x128xbf16>
    %cst_8 = arith.constant dense<0.000000e+00> : vector<16x128xf32>
    %11 = tpu.matmul %9, %10, %cst_8 {dimension_numbers = #tpu.dot_dimension_numbers<[1], [0], [0], [1], [0, 0, 1, 1], [], []>} : vector<16x128xbf16>, vector<128x128xbf16>, vector<16x128xf32> -> vector<16x128xf32>
    %c0_9 = arith.constant 0 : index
    %c0_10 = arith.constant 0 : index
    %12 = vector.load %arg5[%c0_9, %c0_10] : memref<1x128xf32, #tpu.memory_space<vmem>>, vector<1x128xf32>
    %13 = vector.broadcast %12 : vector<1x128xf32> to vector<16x128xf32>
    %14 = arith.addf %11, %13 : vector<16x128xf32>
    %cst_11 = arith.constant 0.000000e+00 : f32
    %15 = vector.broadcast %cst_11 : f32 to vector<16x128xf32>
    %16 = arith.maximumf %14, %15 : vector<16x128xf32>
    %17 = arith.truncf %16 : vector<16x128xf32> to vector<16x128xbf16>
    %c0_12 = arith.constant 0 : index
    %c0_13 = arith.constant 0 : index
    %18 = vector.load %arg6[%c0_12, %c0_13] : memref<128x128xbf16, #tpu.memory_space<vmem>>, vector<128x128xbf16>
    %cst_14 = arith.constant dense<0.000000e+00> : vector<16x128xf32>
    %19 = tpu.matmul %17, %18, %cst_14 {dimension_numbers = #tpu.dot_dimension_numbers<[1], [0], [0], [1], [0, 0, 1, 1], [], []>} : vector<16x128xbf16>, vector<128x128xbf16>, vector<16x128xf32> -> vector<16x128xf32>
    %c0_15 = arith.constant 0 : index
    %c0_16 = arith.constant 0 : index
    %20 = vector.load %arg7[%c0_15, %c0_16] : memref<1x128xf32, #tpu.memory_space<vmem>>, vector<1x128xf32>
    %21 = vector.broadcast %20 : vector<1x128xf32> to vector<16x128xf32>
    %22 = arith.addf %19, %21 : vector<16x128xf32>
    %cst_17 = arith.constant 0.000000e+00 : f32
    %23 = vector.broadcast %cst_17 : f32 to vector<16x128xf32>
    %24 = arith.maximumf %22, %23 : vector<16x128xf32>
    %25 = arith.truncf %24 : vector<16x128xf32> to vector<16x128xbf16>
    %c0_18 = arith.constant 0 : index
    %c0_19 = arith.constant 0 : index
    %26 = vector.load %arg8[%c0_18, %c0_19] : memref<128x128xbf16, #tpu.memory_space<vmem>>, vector<128x128xbf16>
    %cst_20 = arith.constant dense<0.000000e+00> : vector<16x128xf32>
    %27 = tpu.matmul %25, %26, %cst_20 {dimension_numbers = #tpu.dot_dimension_numbers<[1], [0], [0], [1], [0, 0, 1, 1], [], []>} : vector<16x128xbf16>, vector<128x128xbf16>, vector<16x128xf32> -> vector<16x128xf32>
    %c0_21 = arith.constant 0 : index
    %c0_22 = arith.constant 0 : index
    %28 = vector.load %arg9[%c0_21, %c0_22] : memref<1x128xf32, #tpu.memory_space<vmem>>, vector<1x128xf32>
    %29 = vector.broadcast %28 : vector<1x128xf32> to vector<16x128xf32>
    %30 = arith.addf %27, %29 : vector<16x128xf32>
    %cst_23 = arith.constant 0.000000e+00 : f32
    %31 = vector.broadcast %cst_23 : f32 to vector<16x128xf32>
    %32 = arith.maximumf %30, %31 : vector<16x128xf32>
    %33 = arith.truncf %32 : vector<16x128xf32> to vector<16x128xbf16>
    %c0_24 = arith.constant 0 : index
    %c0_25 = arith.constant 0 : index
    %34 = vector.load %arg10[%c0_24, %c0_25] : memref<128x128xbf16, #tpu.memory_space<vmem>>, vector<128x128xbf16>
    %cst_26 = arith.constant dense<0.000000e+00> : vector<16x128xf32>
    %35 = tpu.matmul %33, %34, %cst_26 {dimension_numbers = #tpu.dot_dimension_numbers<[1], [0], [0], [1], [0, 0, 1, 1], [], []>} : vector<16x128xbf16>, vector<128x128xbf16>, vector<16x128xf32> -> vector<16x128xf32>
    %c0_27 = arith.constant 0 : index
    %c0_28 = arith.constant 0 : index
    %36 = vector.load %arg11[%c0_27, %c0_28] : memref<1x128xf32, #tpu.memory_space<vmem>>, vector<1x128xf32>
    %37 = vector.broadcast %36 : vector<1x128xf32> to vector<16x128xf32>
    %38 = arith.addf %35, %37 : vector<16x128xf32>
    %c0_29 = arith.constant 0 : index
    %c0_30 = arith.constant 0 : index
    %39 = vector.load %arg12[%c0_29, %c0_30] : memref<16x128xf32, #tpu.memory_space<vmem>>, vector<16x128xf32>
    tpu.vector_store %arg12[%c0_29, %c0_30], %38 {strides = array<i32>} : memref<16x128xf32, #tpu.memory_space<vmem>>, vector<16x128xf32>,
    return
  }
  func.func @transform_0(%arg0: i32) -> (i32, i32) {
    %c0_i32 = arith.constant 0 : i32
    %c0_i32_0 = arith.constant 0 : i32
    return %arg0, %c0_i32 : i32, i32
  }
  func.func @transform_1(%arg0: i32) -> (i32, i32) {
    %c0_i32 = arith.constant 0 : i32
    %c0_i32_0 = arith.constant 0 : i32
    %c0_i32_1 = arith.constant 0 : i32
    return %c0_i32, %c0_i32_0 : i32, i32
  }
  func.func @transform_2(%arg0: i32) -> (i32, i32) {
    %c0_i32 = arith.constant 0 : i32
    %c0_i32_0 = arith.constant 0 : i32
    %c0_i32_1 = arith.constant 0 : i32
    return %c0_i32, %c0_i32_0 : i32, i32
  }
  func.func @transform_3(%arg0: i32) -> (i32, i32) {
    %c0_i32 = arith.constant 0 : i32
    %c0_i32_0 = arith.constant 0 : i32
    %c0_i32_1 = arith.constant 0 : i32
    return %c0_i32, %c0_i32_0 : i32, i32
  }
  func.func @transform_4(%arg0: i32) -> (i32, i32) {
    %c0_i32 = arith.constant 0 : i32
    %c0_i32_0 = arith.constant 0 : i32
    %c0_i32_1 = arith.constant 0 : i32
    return %c0_i32, %c0_i32_0 : i32, i32
  }
  func.func @transform_5(%arg0: i32) -> (i32, i32) {
    %c0_i32 = arith.constant 0 : i32
    %c0_i32_0 = arith.constant 0 : i32
    %c0_i32_1 = arith.constant 0 : i32
    return %c0_i32, %c0_i32_0 : i32, i32
  }
  func.func @transform_6(%arg0: i32) -> (i32, i32) {
    %c0_i32 = arith.constant 0 : i32
    %c0_i32_0 = arith.constant 0 : i32
    %c0_i32_1 = arith.constant 0 : i32
    return %c0_i32, %c0_i32_0 : i32, i32
  }
  func.func @transform_7(%arg0: i32) -> (i32, i32) {
    %c0_i32 = arith.constant 0 : i32
    %c0_i32_0 = arith.constant 0 : i32
    %c0_i32_1 = arith.constant 0 : i32
    return %c0_i32, %c0_i32_0 : i32, i32
  }
  func.func @transform_8(%arg0: i32) -> (i32, i32) {
    %c0_i32 = arith.constant 0 : i32
    %c0_i32_0 = arith.constant 0 : i32
    %c0_i32_1 = arith.constant 0 : i32
    return %c0_i32, %c0_i32_0 : i32, i32
  }
  func.func @transform_9(%arg0: i32) -> (i32, i32) {
    %c0_i32 = arith.constant 0 : i32
    %c0_i32_0 = arith.constant 0 : i32
    %c0_i32_1 = arith.constant 0 : i32
    return %c0_i32, %c0_i32_0 : i32, i32
  }
  func.func @transform_10(%arg0: i32) -> (i32, i32) {
    %c0_i32 = arith.constant 0 : i32
    %c0_i32_0 = arith.constant 0 : i32
    %c0_i32_1 = arith.constant 0 : i32
    return %c0_i32, %c0_i32_0 : i32, i32
  }
  func.func @transform_11(%arg0: i32) -> (i32, i32) {
    %c0_i32 = arith.constant 0 : i32
    %c0_i32_0 = arith.constant 0 : i32
    return %arg0, %c0_i32 : i32, i32
  }
}

</mosaic_0001>

<llo_original>
// kernel: tpu_custom_call.1
$region0: #{tpu_custom_call.1}
  #allocation0 [shape = 'u32[]', space=smem, size = 0x4, offset = 0x4, fixed_abs, tag = 'smem constant byte address 0x4 - core index']
  #allocation1 [shape = 'u32[144,128]{1,0:T(1,128)}', space=vmem, size = 0x12000, scoped, tag = 'internal scratch']
  %s0 = inlined_call_operand.hbm [shape: f32[20,64], index: 0, kind: input, shape index: {}]
  %s1 = inlined_call_operand.hbm [shape: bf16[64,128], index: 1, kind: input, shape index: {}]
  %s2 = inlined_call_operand.vmem [shape: f32[1,128], index: 2, kind: input, shape index: {}]
  %s3 = inlined_call_operand.hbm [shape: bf16[128,128], index: 3, kind: input, shape index: {}]
  %s4 = inlined_call_operand.vmem [shape: f32[1,128], index: 4, kind: input, shape index: {}]
  %s5 = inlined_call_operand.hbm [shape: bf16[128,128], index: 5, kind: input, shape index: {}]
  %s6 = inlined_call_operand.vmem [shape: f32[1,128], index: 6, kind: input, shape index: {}]
  %s7 = inlined_call_operand.hbm [shape: bf16[128,128], index: 7, kind: input, shape index: {}]
  %s8 = inlined_call_operand.vmem [shape: f32[1,128], index: 8, kind: input, shape index: {}]
  %s9 = inlined_call_operand.hbm [shape: bf16[128,128], index: 9, kind: input, shape index: {}]
  %s10 = inlined_call_operand.vmem [shape: f32[1,128], index: 10, kind: input, shape index: {}]
  %s11 = inlined_call_operand.hbm [shape: f32[20,128], index: 11, kind: output, shape index: {}]
  %s12 = sld [smem:[#allocation0]]
  $region101: #{tpu_custom_call.1} parent=0
    _
  %s14 = ssub.s32 1, %s12
  %s15 = scalar_select 0, %s14, %s12
  $region1: #{tpu_custom_call.1} parent=0
    #allocation2 [shape = 'u8[16384]{0}', space=vmem, size = 0x4000, scoped, tag = 'input window, operand 0']
    #allocation3 [shape = 's32[2]{0}', space=sflag, size = 0x8, scoped, tag = 'scoped memory for tpu_custom_call.1']
    #allocation4 [shape = 's32[2]{0}', space=sflag, size = 0x8, scoped, tag = 'scoped memory for tpu_custom_call.1']
    #allocation5 [shape = 'u8[16384]{0}', space=vmem, size = 0x4000, scoped, tag = 'input window, operand 1, single buffered']
    #allocation6 [shape = 's32[1]{0}', space=sflag, size = 0x4, scoped, tag = 'scoped memory for tpu_custom_call.1']
    #allocation7 [shape = 'u8[32768]{0}', space=vmem, size = 0x8000, scoped, tag = 'input window, operand 3, single buffered']
    #allocation8 [shape = 'u8[32768]{0}', space=vmem, size = 0x8000, scoped, tag = 'input window, operand 5, single buffered']
    #allocation9 [shape = 's32[1]{0}', space=sflag, size = 0x4, scoped, tag = 'scoped memory for tpu_custom_call.1']
    #allocation10 [shape = 'u8[32768]{0}', space=vmem, size = 0x8000, scoped, tag = 'input window, operand 7, single buffered']
    #allocation11 [shape = 'u8[32768]{0}', space=vmem, size = 0x8000, scoped, tag = 'input window, operand 9, single buffered']
    #allocation12 [shape = 's32[1]{0}', space=sflag, size = 0x4, scoped, tag = 'scoped memory for tpu_custom_call.1']
    #allocation13 [shape = 'u8[16384]{0}', space=vmem, size = 0x4000, scoped, tag = 'output window, operand 0']
    %16 = vsyncpa [#allocation3], 0
    %s17 = scalar_lea.sflag [#allocation3], 1
    %18 = vsyncpa %s17, 0
    %19 = vsyncpa [#allocation6], 0
    %20 = vsyncpa [#allocation9], 0
    %21 = vsyncpa [#allocation12], 0
    %22 = vsyncpa [#allocation4], 0
    %s23 = scalar_lea.sflag [#allocation4], 1
    %24 = vsyncpa %s23, 0
    loop: start=0, step=1, limit=4
    $region2: #{tpu_custom_call.1} parent=1 // loop_pre_header
      _
    $region3: #{tpu_custom_call.1} parent=1 // loop_header
      %s26 = sphi 0, %s30
      %p27 = scmp.ge.s32.totalorder %s26, 4
      %s36 = sphi 0, %s38
      %s39 = sphi 0, %s36
      %s40 = sphi 0, %s39
      %s56 = sphi 0, %s40
      %s60 = sphi 0, %s60
      %s62 = sphi 0, %s60
      %s63 = sphi 0, %s62
      %s77 = sphi 0, %s63
      %s81 = sphi 0, %s81
      %s83 = sphi 0, %s81
      %s84 = sphi 0, %s83
      %s98 = sphi 0, %s84
      %s102 = sphi 0, %s102
      %s104 = sphi 0, %s102
      %s105 = sphi 0, %s104
      %s119 = sphi 0, %s105
      %s123 = sphi 0, %s123
      %s125 = sphi 0, %s123
      %s126 = sphi 0, %s125
      %s140 = sphi 0, %s126
      %s144 = sphi 0, %s144
      %s146 = sphi 0, %s144
      %s147 = sphi 0, %s146
      %s161 = sphi 0, %s147
      %s165 = sphi 0, %s165
      %s167 = sphi 0, %s165
      %s168 = sphi 0, %s167
      %s182 = sphi 0, %s168
      %s186 = sphi 0, %s186
      %s188 = sphi 0, %s186
      %s189 = sphi 0, %s188
      %s203 = sphi 0, %s189
      %s207 = sphi 0, %s207
      %s209 = sphi 0, %s207
      %s210 = sphi 0, %s209
      %s224 = sphi 0, %s210
      %s228 = sphi 0, %s228
      %s230 = sphi 0, %s228
      %s231 = sphi 0, %s230
      %s245 = sphi 0, %s231
      %s249 = sphi 0, %s249
      %s251 = sphi 0, %s249
      %s252 = sphi 0, %s251
      %s266 = sphi 0, %s252
      %s272 = sphi 0, %s274
      %s275 = sphi 0, %s272
      %s276 = sphi 0, %s275
      %s292 = sphi 0, %s276
    $region4: #{tpu_custom_call.1} parent=1 // loop_header_branch
      %29 = sbr.rel (%p27) target = $region8
    $region5: #{tpu_custom_call.1} parent=1 // loop_body
      %s31 = ssub.s32 %s26, 1
      %s32 = ssub.s32 %s26, 2
      %s33 = sadd.s32 %s26, 1
      %s34 = ssub.s32 %s26, %s33
      %p35 = scmp.eq.s32.totalorder %s34, 0
      %s37 = sadd.s32 %s36, 1
      %s38 = scalar_select %p35, %s36, %s37
      %p41 = pneg %p35
      %p42 = scmp.eq.s32.totalorder %s26, 1
      %p43 = por %p41, %p42
      %p44 = scmp.ne.s32.totalorder %s36, %s39
      %p45 = scmp.eq.s32.totalorder %s26, 0
      %p46 = por %p44, %p45
      %p47 = scmp.ne.s32.totalorder %s36, %s39
      %p48 = scmp.eq.s32.totalorder %s31, 1
      %p49 = por %p47, %p48
      %p50 = scmp.ne.s32.totalorder %s39, %s40
      %p51 = scmp.eq.s32.totalorder %s31, 0
      %p52 = por %p50, %p51
      %p53 = scmp.ne.s32.totalorder %s39, %s40
      %p54 = scmp.eq.s32.totalorder %s32, 1
      %p55 = por %p53, %p54
      %p57 = scmp.ne.s32.totalorder %s40, %s56
      %p58 = scmp.eq.s32.totalorder %s32, 0
      %p59 = por %p57, %p58
      %s61 = sadd.s32 %s60, 1
      %p64 = scmp.eq.s32.totalorder %s26, 1
      %p65 = scmp.ne.s32.totalorder %s60, %s62
      %p66 = scmp.eq.s32.totalorder %s26, 0
      %p67 = por %p65, %p66
      %p68 = scmp.ne.s32.totalorder %s60, %s62
      %p69 = scmp.eq.s32.totalorder %s31, 1
      %p70 = por %p68, %p69
      %p71 = scmp.ne.s32.totalorder %s62, %s63
      %p72 = scmp.eq.s32.totalorder %s31, 0
      %p73 = por %p71, %p72
      %p74 = scmp.ne.s32.totalorder %s62, %s63
      %p75 = scmp.eq.s32.totalorder %s32, 1
      %p76 = por %p74, %p75
      %p78 = scmp.ne.s32.totalorder %s63, %s77
      %p79 = scmp.eq.s32.totalorder %s32, 0
      %p80 = por %p78, %p79
      %s82 = sadd.s32 %s81, 1
      %p85 = scmp.eq.s32.totalorder %s26, 1
      %p86 = scmp.ne.s32.totalorder %s81, %s83
      %p87 = scmp.eq.s32.totalorder %s26, 0
      %p88 = por %p86, %p87
      %p89 = scmp.ne.s32.totalorder %s81, %s83
      %p90 = scmp.eq.s32.totalorder %s31, 1
      %p91 = por %p89, %p90
      %p92 = scmp.ne.s32.totalorder %s83, %s84
      %p93 = scmp.eq.s32.totalorder %s31, 0
      %p94 = por %p92, %p93
      %p95 = scmp.ne.s32.totalorder %s83, %s84
      %p96 = scmp.eq.s32.totalorder %s32, 1
      %p97 = por %p95, %p96
      %p99 = scmp.ne.s32.totalorder %s84, %s98
      %p100 = scmp.eq.s32.totalorder %s32, 0
      %p101 = por %p99, %p100
      %s103 = sadd.s32 %s102, 1
      %p106 = scmp.eq.s32.totalorder %s26, 1
      %p107 = scmp.ne.s32.totalorder %s102, %s104
      %p108 = scmp.eq.s32.totalorder %s26, 0
      %p109 = por %p107, %p108
      %p110 = scmp.ne.s32.totalorder %s102, %s104
      %p111 = scmp.eq.s32.totalorder %s31, 1
      %p112 = por %p110, %p111
      %p113 = scmp.ne.s32.totalorder %s104, %s105
      %p114 = scmp.eq.s32.totalorder %s31, 0
      %p115 = por %p113, %p114
      %p116 = scmp.ne.s32.totalorder %s104, %s105
      %p117 = scmp.eq.s32.totalorder %s32, 1
      %p118 = por %p116, %p117
      %p120 = scmp.ne.s32.totalorder %s105, %s119
      %p121 = scmp.eq.s32.totalorder %s32, 0
      %p122 = por %p120, %p121
      %s124 = sadd.s32 %s123, 1
      %p127 = scmp.eq.s32.totalorder %s26, 1
      %p128 = scmp.ne.s32.totalorder %s123, %s125
      %p129 = scmp.eq.s32.totalorder %s26, 0
      %p130 = por %p128, %p129
      %p131 = scmp.ne.s32.totalorder %s123, %s125
      %p132 = scmp.eq.s32.totalorder %s31, 1
      %p133 = por %p131, %p132
      %p134 = scmp.ne.s32.totalorder %s125, %s126
      %p135 = scmp.eq.s32.totalorder %s31, 0
      %p136 = por %p134, %p135
      %p137 = scmp.ne.s32.totalorder %s125, %s126
      %p138 = scmp.eq.s32.totalorder %s32, 1
      %p139 = por %p137, %p138
      %p141 = scmp.ne.s32.totalorder %s126, %s140
      %p142 = scmp.eq.s32.totalorder %s32, 0
      %p143 = por %p141, %p142
      %s145 = sadd.s32 %s144, 1
      %p148 = scmp.eq.s32.totalorder %s26, 1
      %p149 = scmp.ne.s32.totalorder %s144, %s146
      %p150 = scmp.eq.s32.totalorder %s26, 0
      %p151 = por %p149, %p150
      %p152 = scmp.ne.s32.totalorder %s144, %s146
      %p153 = scmp.eq.s32.totalorder %s31, 1
      %p154 = por %p152, %p153
      %p155 = scmp.ne.s32.totalorder %s146, %s147
      %p156 = scmp.eq.s32.totalorder %s31, 0
      %p157 = por %p155, %p156
      %p158 = scmp.ne.s32.totalorder %s146, %s147
      %p159 = scmp.eq.s32.totalorder %s32, 1
      %p160 = por %p158, %p159
      %p162 = scmp.ne.s32.totalorder %s147, %s161
      %p163 = scmp.eq.s32.totalorder %s32, 0
      %p164 = por %p162, %p163
      %s166 = sadd.s32 %s165, 1
      %p169 = scmp.eq.s32.totalorder %s26, 1
      %p170 = scmp.ne.s32.totalorder %s165, %s167
      %p171 = scmp.eq.s32.totalorder %s26, 0
      %p172 = por %p170, %p171
      %p173 = scmp.ne.s32.totalorder %s165, %s167
      %p174 = scmp.eq.s32.totalorder %s31, 1
      %p175 = por %p173, %p174
      %p176 = scmp.ne.s32.totalorder %s167, %s168
      %p177 = scmp.eq.s32.totalorder %s31, 0
      %p178 = por %p176, %p177
      %p179 = scmp.ne.s32.totalorder %s167, %s168
      %p180 = scmp.eq.s32.totalorder %s32, 1
      %p181 = por %p179, %p180
      %p183 = scmp.ne.s32.totalorder %s168, %s182
      %p184 = scmp.eq.s32.totalorder %s32, 0
      %p185 = por %p183, %p184
      %s187 = sadd.s32 %s186, 1
      %p190 = scmp.eq.s32.totalorder %s26, 1
      %p191 = scmp.ne.s32.totalorder %s186, %s188
      %p192 = scmp.eq.s32.totalorder %s26, 0
      %p193 = por %p191, %p192
      %p194 = scmp.ne.s32.totalorder %s186, %s188
      %p195 = scmp.eq.s32.totalorder %s31, 1
      %p196 = por %p194, %p195
      %p197 = scmp.ne.s32.totalorder %s188, %s189
      %p198 = scmp.eq.s32.totalorder %s31, 0
      %p199 = por %p197, %p198
      %p200 = scmp.ne.s32.totalorder %s188, %s189
      %p201 = scmp.eq.s32.totalorder %s32, 1
      %p202 = por %p200, %p201
      %p204 = scmp.ne.s32.totalorder %s189, %s203
      %p205 = scmp.eq.s32.totalorder %s32, 0
      %p206 = por %p204, %p205
      %s208 = sadd.s32 %s207, 1
      %p211 = scmp.eq.s32.totalorder %s26, 1
      %p212 = scmp.ne.s32.totalorder %s207, %s209
      %p213 = scmp.eq.s32.totalorder %s26, 0
      %p214 = por %p212, %p213
      %p215 = scmp.ne.s32.totalorder %s207, %s209
      %p216 = scmp.eq.s32.totalorder %s31, 1
      %p217 = por %p215, %p216
      %p218 = scmp.ne.s32.totalorder %s209, %s210
      %p219 = scmp.eq.s32.totalorder %s31, 0
      %p220 = por %p218, %p219
      %p221 = scmp.ne.s32.totalorder %s209, %s210
      %p222 = scmp.eq.s32.totalorder %s32, 1
      %p223 = por %p221, %p222
      %p225 = scmp.ne.s32.totalorder %s210, %s224
      %p226 = scmp.eq.s32.totalorder %s32, 0
      %p227 = por %p225, %p226
      %s229 = sadd.s32 %s228, 1
      %p232 = scmp.eq.s32.totalorder %s26, 1
      %p233 = scmp.ne.s32.totalorder %s228, %s230
      %p234 = scmp.eq.s32.totalorder %s26, 0
      %p235 = por %p233, %p234
      %p236 = scmp.ne.s32.totalorder %s228, %s230
      %p237 = scmp.eq.s32.totalorder %s31, 1
      %p238 = por %p236, %p237
      %p239 = scmp.ne.s32.totalorder %s230, %s231
      %p240 = scmp.eq.s32.totalorder %s31, 0
      %p241 = por %p239, %p240
      %p242 = scmp.ne.s32.totalorder %s230, %s231
      %p243 = scmp.eq.s32.totalorder %s32, 1
      %p244 = por %p242, %p243
      %p246 = scmp.ne.s32.totalorder %s231, %s245
      %p247 = scmp.eq.s32.totalorder %s32, 0
      %p248 = por %p246, %p247
      %s250 = sadd.s32 %s249, 1
      %p253 = scmp.eq.s32.totalorder %s26, 1
      %p254 = scmp.ne.s32.totalorder %s249, %s251
      %p255 = scmp.eq.s32.totalorder %s26, 0
      %p256 = por %p254, %p255
      %p257 = scmp.ne.s32.totalorder %s249, %s251
      %p258 = scmp.eq.s32.totalorder %s31, 1
      %p259 = por %p257, %p258
      %p260 = scmp.ne.s32.totalorder %s251, %s252
      %p261 = scmp.eq.s32.totalorder %s31, 0
      %p262 = por %p260, %p261
      %p263 = scmp.ne.s32.totalorder %s251, %s252
      %p264 = scmp.eq.s32.totalorder %s32, 1
      %p265 = por %p263, %p264
      %p267 = scmp.ne.s32.totalorder %s252, %s266
      %p268 = scmp.eq.s32.totalorder %s32, 0
      %p269 = por %p267, %p268
      %s270 = ssub.s32 %s26, %s33
      %p271 = scmp.eq.s32.totalorder %s270, 0
      %s273 = sadd.s32 %s272, 1
      %s274 = scalar_select %p271, %s272, %s273
      %p277 = pneg %p271
      %p278 = scmp.eq.s32.totalorder %s26, 1
      %p279 = por %p277, %p278
      %p280 = scmp.ne.s32.totalorder %s272, %s275
      %p281 = scmp.eq.s32.totalorder %s26, 0
      %p282 = por %p280, %p281
      %p283 = scmp.ne.s32.totalorder %s272, %s275
      %p284 = scmp.eq.s32.totalorder %s31, 1
      %p285 = por %p283, %p284
      %p286 = scmp.ne.s32.totalorder %s275, %s276
      %p287 = scmp.eq.s32.totalorder %s31, 0
      %p288 = por %p286, %p287
      %p289 = scmp.ne.s32.totalorder %s275, %s276
      %p290 = scmp.eq.s32.totalorder %s32, 1
      %p291 = por %p289, %p290
      %p293 = scmp.ne.s32.totalorder %s276, %s292
      %p294 = scmp.eq.s32.totalorder %s32, 0
      %p295 = por %p293, %p294
      %p296 = scmp.le.s32.totalorder 1, %s26
      %p297 = scmp.lt.s32.totalorder %s26, 3
      %p298 = pnand %p296, %p297
      %p299 = pneg %p298
      // Predicated region
      $region9: #{tpu_custom_call.1} parent=5 // pred_check
        _
      $region10: #{tpu_custom_call.1} parent=5 // pred_check_branch
        %301 = sbr.rel (%p298) target = $region12
      $region11: #{tpu_custom_call.1} parent=5 // pred_region
        %s302 = ssub.s32 %s26, 1
        // Predicated region
        $region13: #{tpu_custom_call.1} parent=11 // pred_check
          %p303 = pneg %p73
        $region14: #{tpu_custom_call.1} parent=11 // pred_check_branch
          %305 = sbr.rel (%p303) target = $region16
        $region15: #{tpu_custom_call.1} parent=11 // pred_region
          %s307 = ssub.s32 512, 512
          %308 = vsyncadd [#allocation6], %s307
          %s309 = sshll.u32 [#allocation5], 4
          %s310 = int_to_ptr.vmem [resolvable:$true] %s309
          %315 = dma.hbm_to_vmem [thread:$0]  %s1, 512, %s310, [#allocation6], 64, 64, 4
        $region16: #{tpu_custom_call.1} parent=11 // pred_fallthru
          _
        // Predicated region
        $region17: #{tpu_custom_call.1} parent=11 // pred_check
          %p316 = pneg %p94
        $region18: #{tpu_custom_call.1} parent=11 // pred_check_branch
          %318 = sbr.rel (%p316) target = $region20
        $region19: #{tpu_custom_call.1} parent=11 // pred_region
          _
        $region20: #{tpu_custom_call.1} parent=11 // pred_fallthru
          _
        // Predicated region
        $region21: #{tpu_custom_call.1} parent=11 // pred_check
          %p319 = pneg %p115
        $region22: #{tpu_custom_call.1} parent=11 // pred_check_branch
          %321 = sbr.rel (%p319) target = $region24
        $region23: #{tpu_custom_call.1} parent=11 // pred_region
          %s323 = ssub.s32 1024, 1024
          %324 = vsyncadd [#allocation6], %s323
          %s325 = sshll.u32 [#allocation7], 4
          %s326 = int_to_ptr.vmem [resolvable:$true] %s325
          %331 = dma.hbm_to_vmem [thread:$0]  %s3, 1024, %s326, [#allocation6], 64, 64, 4
        $region24: #{tpu_custom_call.1} parent=11 // pred_fallthru
          _
        // Predicated region
        $region25: #{tpu_custom_call.1} parent=11 // pred_check
          %p332 = pneg %p136
        $region26: #{tpu_custom_call.1} parent=11 // pred_check_branch
          %334 = sbr.rel (%p332) target = $region28
        $region27: #{tpu_custom_call.1} parent=11 // pred_region
          _
        $region28: #{tpu_custom_call.1} parent=11 // pred_fallthru
          _
        // Predicated region
        $region29: #{tpu_custom_call.1} parent=11 // pred_check
          %p335 = pneg %p157
        $region30: #{tpu_custom_call.1} parent=11 // pred_check_branch
          %337 = sbr.rel (%p335) target = $region32
        $region31: #{tpu_custom_call.1} parent=11 // pred_region
          %s339 = ssub.s32 1024, 1024
          %340 = vsyncadd [#allocation9], %s339
          %s341 = sshll.u32 [#allocation8], 4
          %s342 = int_to_ptr.vmem [resolvable:$true] %s341
          %347 = dma.hbm_to_vmem [thread:$0]  %s5, 1024, %s342, [#allocation9], 64, 64, 4
        $region32: #{tpu_custom_call.1} parent=11 // pred_fallthru
          _
        // Predicated region
        $region33: #{tpu_custom_call.1} parent=11 // pred_check
          %p348 = pneg %p178
        $region34: #{tpu_custom_call.1} parent=11 // pred_check_branch
          %350 = sbr.rel (%p348) target = $region36
        $region35: #{tpu_custom_call.1} parent=11 // pred_region
          _
        $region36: #{tpu_custom_call.1} parent=11 // pred_fallthru
          _
        // Predicated region
        $region37: #{tpu_custom_call.1} parent=11 // pred_check
          %p351 = pneg %p199
        $region38: #{tpu_custom_call.1} parent=11 // pred_check_branch
          %353 = sbr.rel (%p351) target = $region40
        $region39: #{tpu_custom_call.1} parent=11 // pred_region
          %s355 = ssub.s32 1024, 1024
          %356 = vsyncadd [#allocation9], %s355
          %s357 = sshll.u32 [#allocation10], 4
          %s358 = int_to_ptr.vmem [resolvable:$true] %s357
          %363 = dma.hbm_to_vmem [thread:$0]  %s7, 1024, %s358, [#allocation9], 64, 64, 4
        $region40: #{tpu_custom_call.1} parent=11 // pred_fallthru
          _
        // Predicated region
        $region41: #{tpu_custom_call.1} parent=11 // pred_check
          %p364 = pneg %p220
        $region42: #{tpu_custom_call.1} parent=11 // pred_check_branch
          %366 = sbr.rel (%p364) target = $region44
        $region43: #{tpu_custom_call.1} parent=11 // pred_region
          _
        $region44: #{tpu_custom_call.1} parent=11 // pred_fallthru
          _
        // Predicated region
        $region45: #{tpu_custom_call.1} parent=11 // pred_check
          %p367 = pneg %p241
        $region46: #{tpu_custom_call.1} parent=11 // pred_check_branch
          %369 = sbr.rel (%p367) target = $region48
        $region47: #{tpu_custom_call.1} parent=11 // pred_region
          %s371 = ssub.s32 1024, 1024
          %372 = vsyncadd [#allocation12], %s371
          %s373 = sshll.u32 [#allocation11], 4
          %s374 = int_to_ptr.vmem [resolvable:$true] %s373
          %379 = dma.hbm_to_vmem [thread:$0]  %s9, 1024, %s374, [#allocation12], 64, 64, 4
        $region48: #{tpu_custom_call.1} parent=11 // pred_fallthru
          _
        // Predicated region
        $region49: #{tpu_custom_call.1} parent=11 // pred_check
          %p380 = pneg %p262
        $region50: #{tpu_custom_call.1} parent=11 // pred_check_branch
          %382 = sbr.rel (%p380) target = $region52
        $region51: #{tpu_custom_call.1} parent=11 // pred_region
          _
        $region52: #{tpu_custom_call.1} parent=11 // pred_fallthru
          _
      $region12: #{tpu_custom_call.1} parent=5 // pred_fallthru
        _
      %p383 = scmp.lt.s32.totalorder %s26, 2
      // Predicated region
      $region53: #{tpu_custom_call.1} parent=5 // pred_check
        %p384 = pneg %p383
      $region54: #{tpu_custom_call.1} parent=5 // pred_check_branch
        %386 = sbr.rel (%p384) target = $region56
      $region55: #{tpu_custom_call.1} parent=5 // pred_region
        // Predicated region
        $region57: #{tpu_custom_call.1} parent=55 // pred_check
          %p387 = pneg %p46
        $region58: #{tpu_custom_call.1} parent=55 // pred_check_branch
          %389 = sbr.rel (%p387) target = $region60
        $region59: #{tpu_custom_call.1} parent=55 // pred_region
          %s390 = sand.u32 %s36, 1
          %s391 = scalar_lea.sflag [#allocation3], %s390
          %s392 = sand.u32 %s36, 1
          %s393 = smul.addr %s392, 16
          %s394 = scalar_lea.vmem [#allocation2], %s393
          %s395 = smul.u32 2, %s26
          %s396 = ssub.s32 3, %s395
          %p397 = scmp.lt.s32.totalorder %s396, 2
          %s398 = scalar_select %p397, %s396, 2
          %s399 = smul.u32 128, %s398
          %s401 = ssub.s32 256, %s399
          %402 = vsyncadd %s391, %s401
          %p403 = scmp.ne.s32.totalorder 0, %s399
          %s404 = smul.addr %s395, 128
          %s405 = scalar_lea.hbm %s0, %s404
          %s406 = smul.u32 8, %s398
          %s407 = sshll.u32 %s394, 4
          %s408 = int_to_ptr.vmem [resolvable:$true] %s407
          %s409 = sshll.u32 %s406, 4
          %413 = dma.hbm_to_vmem [thread:$0]  (%p403), %s405, %s409, %s408, %s391, 128, 128, 8
        $region60: #{tpu_custom_call.1} parent=55 // pred_fallthru
          _
      $region56: #{tpu_custom_call.1} parent=5 // pred_fallthru
        _
      %p414 = scmp.le.s32.totalorder 1, %s26
      %p415 = scmp.lt.s32.totalorder %s26, 3
      %p416 = pnand %p414, %p415
      %p417 = pneg %p416
      // Predicated region
      $region61: #{tpu_custom_call.1} parent=5 // pred_check
        _
      $region62: #{tpu_custom_call.1} parent=5 // pred_check_branch
        %419 = sbr.rel (%p416) target = $region64
      $region63: #{tpu_custom_call.1} parent=5 // pred_region
        %s420 = ssub.s32 %s26, 1
        %s421 = sand.u32 %s39, 1
        %s422 = scalar_lea.sflag [#allocation3], %s421
        %s423 = sand.u32 %s39, 1
        %s424 = smul.addr %s423, 16
        %s425 = scalar_lea.vmem [#allocation2], %s424
        // Predicated region
        $region65: #{tpu_custom_call.1} parent=63 // pred_check
          %p426 = pneg %p52
        $region66: #{tpu_custom_call.1} parent=63 // pred_check_branch
          %428 = sbr.rel (%p426) target = $region68
        $region67: #{tpu_custom_call.1} parent=63 // pred_region
          %429 = dma.done %s422, 256
        $region68: #{tpu_custom_call.1} parent=63 // pred_fallthru
          _
        // Predicated region
        $region69: #{tpu_custom_call.1} parent=63 // pred_check
          %p430 = pneg %p73
        $region70: #{tpu_custom_call.1} parent=63 // pred_check_branch
          %432 = sbr.rel (%p430) target = $region72
        $region71: #{tpu_custom_call.1} parent=63 // pred_region
          %433 = dma.done [#allocation6], 512
        $region72: #{tpu_custom_call.1} parent=63 // pred_fallthru
          _
        // Predicated region
        $region73: #{tpu_custom_call.1} parent=63 // pred_check
          %p434 = pneg %p115
        $region74: #{tpu_custom_call.1} parent=63 // pred_check_branch
          %436 = sbr.rel (%p434) target = $region76
        $region75: #{tpu_custom_call.1} parent=63 // pred_region
          %437 = dma.done [#allocation6], 1024
        $region76: #{tpu_custom_call.1} parent=63 // pred_fallthru
          _
        // Predicated region
        $region77: #{tpu_custom_call.1} parent=63 // pred_check
          %p438 = pneg %p157
        $region78: #{tpu_custom_call.1} parent=63 // pred_check_branch
          %440 = sbr.rel (%p438) target = $region80
        $region79: #{tpu_custom_call.1} parent=63 // pred_region
          %441 = dma.done [#allocation9], 1024
        $region80: #{tpu_custom_call.1} parent=63 // pred_fallthru
          _
        // Predicated region
        $region81: #{tpu_custom_call.1} parent=63 // pred_check
          %p442 = pneg %p199
        $region82: #{tpu_custom_call.1} parent=63 // pred_check_branch
          %444 = sbr.rel (%p442) target = $region84
        $region83: #{tpu_custom_call.1} parent=63 // pred_region
          %445 = dma.done [#allocation9], 1024
        $region84: #{tpu_custom_call.1} parent=63 // pred_fallthru
          _
        // Predicated region
        $region85: #{tpu_custom_call.1} parent=63 // pred_check
          %p446 = pneg %p241
        $region86: #{tpu_custom_call.1} parent=63 // pred_check_branch
          %448 = sbr.rel (%p446) target = $region88
        $region87: #{tpu_custom_call.1} parent=63 // pred_region
          %449 = dma.done [#allocation12], 1024
        $region88: #{tpu_custom_call.1} parent=63 // pred_fallthru
          _
        %s450 = sand.u32 %s39, 1
        %s451 = scalar_lea.sflag [#allocation3], %s450
        %s452 = sand.u32 %s39, 1
        %s453 = smul.addr %s452, 16
        %s454 = scalar_lea.vmem [#allocation2], %s453
        %p455 = pneg %p52
        %p456 = pneg %p49
        %p457 = pneg %p73
        %p458 = pneg %p70
        %p459 = pneg %p94
        %p460 = pneg %p91
        %p461 = pneg %p115
        %p462 = pneg %p112
        %p463 = pneg %p136
        %p464 = pneg %p133
        %p465 = pneg %p157
        %p466 = pneg %p154
        %p467 = pneg %p178
        %p468 = pneg %p175
        %p469 = pneg %p199
        %p470 = pneg %p196
        %p471 = pneg %p220
        %p472 = pneg %p217
        %p473 = pneg %p241
        %p474 = pneg %p238
        %p475 = pneg %p262
        %p476 = pneg %p259
        %p477 = pneg %p288
        %p478 = pneg %p285
        %s479 = sand.u32 %s275, 1
        %s480 = scalar_lea.sflag [#allocation4], %s479
        %s481 = sand.u32 %s275, 1
        %s482 = smul.addr %s481, 16
        %s483 = scalar_lea.vmem [#allocation13], %s482
        %s484 = smul.u32 2, %s31
        %s485 = ssub.s32 3, %s484
        %p486 = scmp.lt.s32.totalorder %s485, 2
        %s487 = scalar_select %p486, %s485, 2
        %s488 = smul.u32 128, %s487
        %s489 = smul.u32 2, %s31
        %s490 = ssub.s32 3, %s489
        %p491 = scmp.lt.s32.totalorder %s490, 2
        %s492 = scalar_select %p491, %s490, 2
        %s493 = smul.u32 128, %s492
        %v495 = vld [vmem:[%s425] sm:$0xff]
        %v496 = vld [vmem:[%s425 + $0x8] sm:$0xff]
        %v497 = vpack.c.bf16 %v496, %v495
        %v498 = vld [vmem:[#allocation5] sm:$0xf]
        %v499 = vld [vmem:[#allocation5 + $0x4] sm:$0xf]
        %v500 = vld [vmem:[#allocation5 + $0x8] sm:$0xf]
        %v501 = vld [vmem:[#allocation5 + $0xc] sm:$0xf]
        %v502 = vld [vmem:[#allocation5 + $0x10] sm:$0xf]
        %v503 = vld [vmem:[#allocation5 + $0x14] sm:$0xf]
        %v504 = vld [vmem:[#allocation5 + $0x18] sm:$0xf]
        %v505 = vld [vmem:[#allocation5 + $0x1c] sm:$0xf]
        %v506 = vld [vmem:[%s2] sm:$0x1]
        %v508 = vlaneseq
        %v509 = vshrl.u32 %v508, 7
        %v510 = vsub.s32 0, %v509
        %v511 = vrot.slane %v506, %v510
        %v521 = vunpack.c.l.b16 %v498
        %v522 = vunpack.c.l.b16 %v499
        %v523 = vunpack.c.l.b16 %v500
        %v524 = vunpack.c.l.b16 %v501
        %v525 = vunpack.c.l.b16 %v502
        %v526 = vunpack.c.l.b16 %v503
        %v527 = vunpack.c.l.b16 %v504
        %v528 = vunpack.c.l.b16 %v505
        %v529 = vpack.c.b16 %v522, %v521
        %v530 = vpack.c.b16 %v524, %v523
        %v531 = vpack.c.b16 %v526, %v525
        %v532 = vpack.c.b16 %v528, %v527
        %vm537 = vcmask 523264
        %v539 = vsel %vm537, %v497, 0
        %541 = vmatprep.subr.bf16.mxu0 0
        %542 = vmatpush1.bf16.msra.mxu0 %v529
        %543 = vmatprep.subr.bf16.mxu0 0
        %544 = vmatpush1.bf16.msra.mxu0 %v530
        %545 = vmatprep.subr.bf16.mxu0 0
        %546 = vmatpush1.bf16.msra.mxu0 %v531
        %547 = vmatprep.subr.bf16.mxu0 0
        %548 = vmatpush1.bf16.msra.mxu0 %v532
        %549 = vmatprep.subr.bf16.mxu0 0
        %550 = vmatpush1.bf16.msra.mxu0 0
        %551 = vmatprep.subr.bf16.mxu0 0
        %552 = vmatpush1.bf16.msra.mxu0 0
        %553 = vmatprep.subr.bf16.mxu0 0
        %554 = vmatpush1.bf16.msra.mxu0 0
        %555 = vmatprep.subr.bf16.mxu0 0
        %556 = vmatpush1.bf16.msra.mxu0 0
        %557 = vmatprep.subr.bf16.mxu0 0
        %558 = vmatpush1.bf16.msra.mxu0 0
        %559 = vmatprep.subr.bf16.mxu0 0
        %560 = vmatpush1.bf16.msra.mxu0 0
        %561 = vmatprep.subr.bf16.mxu0 0
        %562 = vmatpush1.bf16.msra.mxu0 0
        %563 = vmatprep.subr.bf16.mxu0 0
        %564 = vmatpush1.bf16.msra.mxu0 0
        %565 = vmatprep.subr.bf16.mxu0 0
        %566 = vmatpush1.bf16.msra.mxu0 0
        %567 = vmatprep.subr.bf16.mxu0 0
        %568 = vmatpush1.bf16.msra.mxu0 0
        %569 = vmatprep.subr.bf16.mxu0 0
        %570 = vmatpush1.bf16.msra.mxu0 0
        %571 = vmatprep.subr.bf16.mxu0 0
        %572 = vmatpush1.bf16.msra.mxu0 0
        %573 = vmatprep.mubr.bf16.mxu0 0
        %574 = vmatmul.mubr.bf16.gmra.mrb[0].mxu0 %v539
        %v575 = vpop.f32.mrb[0].mxu0
        %v576 = vadd.f32 %v511, %v575
        %v577 = vpop.f32.mrb[0].mxu0
        %v578 = vpop.f32.mrb[0].mxu0
        %v579 = vadd.f32 %v511, %v578
        %v580 = vpop.f32.mrb[0].mxu0
        %581 = vdwg.mxu0
        %v582 = vmax.f32 %v576, 0.0
        %v583 = vmax.f32 %v579, 0.0
        %v584 = vpack.c.bf16 %v583, %v582
        %v585 = vld [vmem:[#allocation7] sm:$0xf]
        %v586 = vld [vmem:[#allocation7 + $0x4] sm:$0xf]
        %v587 = vld [vmem:[#allocation7 + $0x8] sm:$0xf]
        %v588 = vld [vmem:[#allocation7 + $0xc] sm:$0xf]
        %v589 = vld [vmem:[#allocation7 + $0x10] sm:$0xf]
        %v590 = vld [vmem:[#allocation7 + $0x14] sm:$0xf]
        %v591 = vld [vmem:[#allocation7 + $0x18] sm:$0xf]
        %v592 = vld [vmem:[#allocation7 + $0x1c] sm:$0xf]
        %v593 = vld [vmem:[#allocation7 + $0x20] sm:$0xf]
        %v594 = vld [vmem:[#allocation7 + $0x24] sm:$0xf]
        %v595 = vld [vmem:[#allocation7 + $0x28] sm:$0xf]
        %v596 = vld [vmem:[#allocation7 + $0x2c] sm:$0xf]
        %v597 = vld [vmem:[#allocation7 + $0x30] sm:$0xf]
        %v598 = vld [vmem:[#allocation7 + $0x34] sm:$0xf]
        %v599 = vld [vmem:[#allocation7 + $0x38] sm:$0xf]
        %v600 = vld [vmem:[#allocation7 + $0x3c] sm:$0xf]
        %v601 = vld [vmem:[%s4] sm:$0x1]
        %v603 = vlaneseq
        %v604 = vshrl.u32 %v603, 7
        %v605 = vsub.s32 0, %v604
        %v606 = vrot.slane %v601, %v605
        %v624 = vunpack.c.l.b16 %v585
        %v625 = vunpack.c.l.b16 %v586
        %v626 = vunpack.c.l.b16 %v587
        %v627 = vunpack.c.l.b16 %v588
        %v628 = vunpack.c.l.b16 %v589
        %v629 = vunpack.c.l.b16 %v590
        %v630 = vunpack.c.l.b16 %v591
        %v631 = vunpack.c.l.b16 %v592
        %v632 = vunpack.c.l.b16 %v593
        %v633 = vunpack.c.l.b16 %v594
        %v634 = vunpack.c.l.b16 %v595
        %v635 = vunpack.c.l.b16 %v596
        %v636 = vunpack.c.l.b16 %v597
        %v637 = vunpack.c.l.b16 %v598
        %v638 = vunpack.c.l.b16 %v599
        %v639 = vunpack.c.l.b16 %v600
        %v640 = vpack.c.b16 %v625, %v624
        %v641 = vpack.c.b16 %v627, %v626
        %v642 = vpack.c.b16 %v629, %v628
        %v643 = vpack.c.b16 %v631, %v630
        %v644 = vpack.c.b16 %v633, %v632
        %v645 = vpack.c.b16 %v635, %v634
        %v646 = vpack.c.b16 %v637, %v636
        %v647 = vpack.c.b16 %v639, %v638
        %656 = vmatprep.subr.bf16.mxu0 0
        %657 = vmatpush1.bf16.msra.mxu0 %v640
        %658 = vmatprep.subr.bf16.mxu0 0
        %659 = vmatpush1.bf16.msra.mxu0 %v641
        %660 = vmatprep.subr.bf16.mxu0 0
        %661 = vmatpush1.bf16.msra.mxu0 %v642
        %662 = vmatprep.subr.bf16.mxu0 0
        %663 = vmatpush1.bf16.msra.mxu0 %v643
        %664 = vmatprep.subr.bf16.mxu0 0
        %665 = vmatpush1.bf16.msra.mxu0 %v644
        %666 = vmatprep.subr.bf16.mxu0 0
        %667 = vmatpush1.bf16.msra.mxu0 %v645
        %668 = vmatprep.subr.bf16.mxu0 0
        %669 = vmatpush1.bf16.msra.mxu0 %v646
        %670 = vmatprep.subr.bf16.mxu0 0
        %671 = vmatpush1.bf16.msra.mxu0 %v647
        %672 = vmatprep.subr.bf16.mxu0 0
        %673 = vmatpush1.bf16.msra.mxu0 0
        %674 = vmatprep.subr.bf16.mxu0 0
        %675 = vmatpush1.bf16.msra.mxu0 0
        %676 = vmatprep.subr.bf16.mxu0 0
        %677 = vmatpush1.bf16.msra.mxu0 0
        %678 = vmatprep.subr.bf16.mxu0 0
        %679 = vmatpush1.bf16.msra.mxu0 0
        %680 = vmatprep.subr.bf16.mxu0 0
        %681 = vmatpush1.bf16.msra.mxu0 0
        %682 = vmatprep.subr.bf16.mxu0 0
        %683 = vmatpush1.bf16.msra.mxu0 0
        %684 = vmatprep.subr.bf16.mxu0 0
        %685 = vmatpush1.bf16.msra.mxu0 0
        %686 = vmatprep.subr.bf16.mxu0 0
        %687 = vmatpush1.bf16.msra.mxu0 0
        %688 = vmatprep.mubr.bf16.mxu0 0
        %689 = vmatmul.mubr.bf16.gmra.mrb[0].mxu0 %v584
        %v690 = vpop.f32.mrb[0].mxu0
        %v691 = vadd.f32 %v606, %v690
        %v692 = vpop.f32.mrb[0].mxu0
        %v693 = vpop.f32.mrb[0].mxu0
        %v694 = vadd.f32 %v606, %v693
        %v695 = vpop.f32.mrb[0].mxu0
        %696 = vdwg.mxu0
        %v697 = vmax.f32 %v691, 0.0
        %v698 = vmax.f32 %v694, 0.0
        %v699 = vpack.c.bf16 %v698, %v697
        %v700 = vld [vmem:[#allocation8] sm:$0xf]
        %v701 = vld [vmem:[#allocation8 + $0x4] sm:$0xf]
        %v702 = vld [vmem:[#allocation8 + $0x8] sm:$0xf]
        %v703 = vld [vmem:[#allocation8 + $0xc] sm:$0xf]
        %v704 = vld [vmem:[#allocation8 + $0x10] sm:$0xf]
        %v705 = vld [vmem:[#allocation8 + $0x14] sm:$0xf]
        %v706 = vld [vmem:[#allocation8 + $0x18] sm:$0xf]
        %v707 = vld [vmem:[#allocation8 + $0x1c] sm:$0xf]
        %v708 = vld [vmem:[#allocation8 + $0x20] sm:$0xf]
        %v709 = vld [vmem:[#allocation8 + $0x24] sm:$0xf]
        %v710 = vld [vmem:[#allocation8 + $0x28] sm:$0xf]
        %v711 = vld [vmem:[#allocation8 + $0x2c] sm:$0xf]
        %v712 = vld [vmem:[#allocation8 + $0x30] sm:$0xf]
        %v713 = vld [vmem:[#allocation8 + $0x34] sm:$0xf]
        %v714 = vld [vmem:[#allocation8 + $0x38] sm:$0xf]
        %v715 = vld [vmem:[#allocation8 + $0x3c] sm:$0xf]
        %v716 = vld [vmem:[%s6] sm:$0x1]
        %v718 = vlaneseq
        %v719 = vshrl.u32 %v718, 7
        %v720 = vsub.s32 0, %v719
        %v721 = vrot.slane %v716, %v720
        %v739 = vunpack.c.l.b16 %v700
        %v740 = vunpack.c.l.b16 %v701
        %v741 = vunpack.c.l.b16 %v702
        %v742 = vunpack.c.l.b16 %v703
        %v743 = vunpack.c.l.b16 %v704
        %v744 = vunpack.c.l.b16 %v705
        %v745 = vunpack.c.l.b16 %v706
        %v746 = vunpack.c.l.b16 %v707
        %v747 = vunpack.c.l.b16 %v708
        %v748 = vunpack.c.l.b16 %v709
        %v749 = vunpack.c.l.b16 %v710
        %v750 = vunpack.c.l.b16 %v711
        %v751 = vunpack.c.l.b16 %v712
        %v752 = vunpack.c.l.b16 %v713
        %v753 = vunpack.c.l.b16 %v714
        %v754 = vunpack.c.l.b16 %v715
        %v755 = vpack.c.b16 %v740, %v739
        %v756 = vpack.c.b16 %v742, %v741
        %v757 = vpack.c.b16 %v744, %v743
        %v758 = vpack.c.b16 %v746, %v745
        %v759 = vpack.c.b16 %v748, %v747
        %v760 = vpack.c.b16 %v750, %v749
        %v761 = vpack.c.b16 %v752, %v751
        %v762 = vpack.c.b16 %v754, %v753
        %771 = vmatprep.subr.bf16.mxu0 0
        %772 = vmatpush1.bf16.msra.mxu0 %v755
        %773 = vmatprep.subr.bf16.mxu0 0
        %774 = vmatpush1.bf16.msra.mxu0 %v756
        %775 = vmatprep.subr.bf16.mxu0 0
        %776 = vmatpush1.bf16.msra.mxu0 %v757
        %777 = vmatprep.subr.bf16.mxu0 0
        %778 = vmatpush1.bf16.msra.mxu0 %v758
        %779 = vmatprep.subr.bf16.mxu0 0
        %780 = vmatpush1.bf16.msra.mxu0 %v759
        %781 = vmatprep.subr.bf16.mxu0 0
        %782 = vmatpush1.bf16.msra.mxu0 %v760
        %783 = vmatprep.subr.bf16.mxu0 0
        %784 = vmatpush1.bf16.msra.mxu0 %v761
        %785 = vmatprep.subr.bf16.mxu0 0
        %786 = vmatpush1.bf16.msra.mxu0 %v762
        %787 = vmatprep.subr.bf16.mxu0 0
        %788 = vmatpush1.bf16.msra.mxu0 0
        %789 = vmatprep.subr.bf16.mxu0 0
        %790 = vmatpush1.bf16.msra.mxu0 0
        %791 = vmatprep.subr.bf16.mxu0 0
        %792 = vmatpush1.bf16.msra.mxu0 0
        %793 = vmatprep.subr.bf16.mxu0 0
        %794 = vmatpush1.bf16.msra.mxu0 0
        %795 = vmatprep.subr.bf16.mxu0 0
        %796 = vmatpush1.bf16.msra.mxu0 0
        %797 = vmatprep.subr.bf16.mxu0 0
        %798 = vmatpush1.bf16.msra.mxu0 0
        %799 = vmatprep.subr.bf16.mxu0 0
        %800 = vmatpush1.bf16.msra.mxu0 0
        %801 = vmatprep.subr.bf16.mxu0 0
        %802 = vmatpush1.bf16.msra.mxu0 0
        %803 = vmatprep.mubr.bf16.mxu0 0
        %804 = vmatmul.mubr.bf16.gmra.mrb[0].mxu0 %v699
        %v805 = vpop.f32.mrb[0].mxu0
        %v806 = vadd.f32 %v721, %v805
        %v807 = vpop.f32.mrb[0].mxu0
        %v808 = vpop.f32.mrb[0].mxu0
        %v809 = vadd.f32 %v721, %v808
        %v810 = vpop.f32.mrb[0].mxu0
        %811 = vdwg.mxu0
        %v812 = vmax.f32 %v806, 0.0
        %v813 = vmax.f32 %v809, 0.0
        %v814 = vpack.c.bf16 %v813, %v812
        %v815 = vld [vmem:[#allocation10] sm:$0xf]
        %v816 = vld [vmem:[#allocation10 + $0x4] sm:$0xf]
        %v817 = vld [vmem:[#allocation10 + $0x8] sm:$0xf]
        %v818 = vld [vmem:[#allocation10 + $0xc] sm:$0xf]
        %v819 = vld [vmem:[#allocation10 + $0x10] sm:$0xf]
        %v820 = vld [vmem:[#allocation10 + $0x14] sm:$0xf]
        %v821 = vld [vmem:[#allocation10 + $0x18] sm:$0xf]
        %v822 = vld [vmem:[#allocation10 + $0x1c] sm:$0xf]
        %v823 = vld [vmem:[#allocation10 + $0x20] sm:$0xf]
        %v824 = vld [vmem:[#allocation10 + $0x24] sm:$0xf]
        %v825 = vld [vmem:[#allocation10 + $0x28] sm:$0xf]
        %v826 = vld [vmem:[#allocation10 + $0x2c] sm:$0xf]
        %v827 = vld [vmem:[#allocation10 + $0x30] sm:$0xf]
        %v828 = vld [vmem:[#allocation10 + $0x34] sm:$0xf]
        %v829 = vld [vmem:[#allocation10 + $0x38] sm:$0xf]
        %v830 = vld [vmem:[#allocation10 + $0x3c] sm:$0xf]
        %v831 = vld [vmem:[%s8] sm:$0x1]
        %v833 = vlaneseq
        %v834 = vshrl.u32 %v833, 7
        %v835 = vsub.s32 0, %v834
        %v836 = vrot.slane %v831, %v835
        %v854 = vunpack.c.l.b16 %v815
        %v855 = vunpack.c.l.b16 %v816
        %v856 = vunpack.c.l.b16 %v817
        %v857 = vunpack.c.l.b16 %v818
        %v858 = vunpack.c.l.b16 %v819
        %v859 = vunpack.c.l.b16 %v820
        %v860 = vunpack.c.l.b16 %v821
        %v861 = vunpack.c.l.b16 %v822
        %v862 = vunpack.c.l.b16 %v823
        %v863 = vunpack.c.l.b16 %v824
        %v864 = vunpack.c.l.b16 %v825
        %v865 = vunpack.c.l.b16 %v826
        %v866 = vunpack.c.l.b16 %v827
        %v867 = vunpack.c.l.b16 %v828
        %v868 = vunpack.c.l.b16 %v829
        %v869 = vunpack.c.l.b16 %v830
        %v870 = vpack.c.b16 %v855, %v854
        %v871 = vpack.c.b16 %v857, %v856
        %v872 = vpack.c.b16 %v859, %v858
        %v873 = vpack.c.b16 %v861, %v860
        %v874 = vpack.c.b16 %v863, %v862
        %v875 = vpack.c.b16 %v865, %v864
        %v876 = vpack.c.b16 %v867, %v866
        %v877 = vpack.c.b16 %v869, %v868
        %886 = vmatprep.subr.bf16.mxu0 0
        %887 = vmatpush1.bf16.msra.mxu0 %v870
        %888 = vmatprep.subr.bf16.mxu0 0
        %889 = vmatpush1.bf16.msra.mxu0 %v871
        %890 = vmatprep.subr.bf16.mxu0 0
        %891 = vmatpush1.bf16.msra.mxu0 %v872
        %892 = vmatprep.subr.bf16.mxu0 0
        %893 = vmatpush1.bf16.msra.mxu0 %v873
        %894 = vmatprep.subr.bf16.mxu0 0
        %895 = vmatpush1.bf16.msra.mxu0 %v874
        %896 = vmatprep.subr.bf16.mxu0 0
        %897 = vmatpush1.bf16.msra.mxu0 %v875
        %898 = vmatprep.subr.bf16.mxu0 0
        %899 = vmatpush1.bf16.msra.mxu0 %v876
        %900 = vmatprep.subr.bf16.mxu0 0
        %901 = vmatpush1.bf16.msra.mxu0 %v877
        %902 = vmatprep.subr.bf16.mxu0 0
        %903 = vmatpush1.bf16.msra.mxu0 0
        %904 = vmatprep.subr.bf16.mxu0 0
        %905 = vmatpush1.bf16.msra.mxu0 0
        %906 = vmatprep.subr.bf16.mxu0 0
        %907 = vmatpush1.bf16.msra.mxu0 0
        %908 = vmatprep.subr.bf16.mxu0 0
        %909 = vmatpush1.bf16.msra.mxu0 0
        %910 = vmatprep.subr.bf16.mxu0 0
        %911 = vmatpush1.bf16.msra.mxu0 0
        %912 = vmatprep.subr.bf16.mxu0 0
        %913 = vmatpush1.bf16.msra.mxu0 0
        %914 = vmatprep.subr.bf16.mxu0 0
        %915 = vmatpush1.bf16.msra.mxu0 0
        %916 = vmatprep.subr.bf16.mxu0 0
        %917 = vmatpush1.bf16.msra.mxu0 0
        %918 = vmatprep.mubr.bf16.mxu0 0
        %919 = vmatmul.mubr.bf16.gmra.mrb[0].mxu0 %v814
        %v920 = vpop.f32.mrb[0].mxu0
        %v921 = vadd.f32 %v836, %v920
        %v922 = vpop.f32.mrb[0].mxu0
        %v923 = vpop.f32.mrb[0].mxu0
        %v924 = vadd.f32 %v836, %v923
        %v925 = vpop.f32.mrb[0].mxu0
        %926 = vdwg.mxu0
        %v927 = vmax.f32 %v921, 0.0
        %v928 = vmax.f32 %v924, 0.0
        %v929 = vpack.c.bf16 %v928, %v927
        %v930 = vld [vmem:[#allocation11] sm:$0xf]
        %v931 = vld [vmem:[#allocation11 + $0x4] sm:$0xf]
        %v932 = vld [vmem:[#allocation11 + $0x8] sm:$0xf]
        %v933 = vld [vmem:[#allocation11 + $0xc] sm:$0xf]
        %v934 = vld [vmem:[#allocation11 + $0x10] sm:$0xf]
        %v935 = vld [vmem:[#allocation11 + $0x14] sm:$0xf]
        %v936 = vld [vmem:[#allocation11 + $0x18] sm:$0xf]
        %v937 = vld [vmem:[#allocation11 + $0x1c] sm:$0xf]
        %v938 = vld [vmem:[#allocation11 + $0x20] sm:$0xf]
        %v939 = vld [vmem:[#allocation11 + $0x24] sm:$0xf]
        %v940 = vld [vmem:[#allocation11 + $0x28] sm:$0xf]
        %v941 = vld [vmem:[#allocation11 + $0x2c] sm:$0xf]
        %v942 = vld [vmem:[#allocation11 + $0x30] sm:$0xf]
        %v943 = vld [vmem:[#allocation11 + $0x34] sm:$0xf]
        %v944 = vld [vmem:[#allocation11 + $0x38] sm:$0xf]
        %v945 = vld [vmem:[#allocation11 + $0x3c] sm:$0xf]
        %v946 = vld [vmem:[%s10] sm:$0x1]
        %v948 = vlaneseq
        %v949 = vshrl.u32 %v948, 7
        %v950 = vsub.s32 0, %v949
        %v951 = vrot.slane %v946, %v950
        %v969 = vunpack.c.l.b16 %v930
        %v970 = vunpack.c.l.b16 %v931
        %v971 = vunpack.c.l.b16 %v932
        %v972 = vunpack.c.l.b16 %v933
        %v973 = vunpack.c.l.b16 %v934
        %v974 = vunpack.c.l.b16 %v935
        %v975 = vunpack.c.l.b16 %v936
        %v976 = vunpack.c.l.b16 %v937
        %v977 = vunpack.c.l.b16 %v938
        %v978 = vunpack.c.l.b16 %v939
        %v979 = vunpack.c.l.b16 %v940
        %v980 = vunpack.c.l.b16 %v941
        %v981 = vunpack.c.l.b16 %v942
        %v982 = vunpack.c.l.b16 %v943
        %v983 = vunpack.c.l.b16 %v944
        %v984 = vunpack.c.l.b16 %v945
        %v985 = vpack.c.b16 %v970, %v969
        %v986 = vpack.c.b16 %v972, %v971
        %v987 = vpack.c.b16 %v974, %v973
        %v988 = vpack.c.b16 %v976, %v975
        %v989 = vpack.c.b16 %v978, %v977
        %v990 = vpack.c.b16 %v980, %v979
        %v991 = vpack.c.b16 %v982, %v981
        %v992 = vpack.c.b16 %v984, %v983
        %1001 = vmatprep.subr.bf16.mxu0 0
        %1002 = vmatpush1.bf16.msra.mxu0 %v985
        %1003 = vmatprep.subr.bf16.mxu0 0
        %1004 = vmatpush1.bf16.msra.mxu0 %v986
        %1005 = vmatprep.subr.bf16.mxu0 0
        %1006 = vmatpush1.bf16.msra.mxu0 %v987
        %1007 = vmatprep.subr.bf16.mxu0 0
        %1008 = vmatpush1.bf16.msra.mxu0 %v988
        %1009 = vmatprep.subr.bf16.mxu0 0
        %1010 = vmatpush1.bf16.msra.mxu0 %v989
        %1011 = vmatprep.subr.bf16.mxu0 0
        %1012 = vmatpush1.bf16.msra.mxu0 %v990
        %1013 = vmatprep.subr.bf16.mxu0 0
        %1014 = vmatpush1.bf16.msra.mxu0 %v991
        %1015 = vmatprep.subr.bf16.mxu0 0
        %1016 = vmatpush1.bf16.msra.mxu0 %v992
        %1017 = vmatprep.subr.bf16.mxu0 0
        %1018 = vmatpush1.bf16.msra.mxu0 0
        %1019 = vmatprep.subr.bf16.mxu0 0
        %1020 = vmatpush1.bf16.msra.mxu0 0
        %1021 = vmatprep.subr.bf16.mxu0 0
        %1022 = vmatpush1.bf16.msra.mxu0 0
        %1023 = vmatprep.subr.bf16.mxu0 0
        %1024 = vmatpush1.bf16.msra.mxu0 0
        %1025 = vmatprep.subr.bf16.mxu0 0
        %1026 = vmatpush1.bf16.msra.mxu0 0
        %1027 = vmatprep.subr.bf16.mxu0 0
        %1028 = vmatpush1.bf16.msra.mxu0 0
        %1029 = vmatprep.subr.bf16.mxu0 0
        %1030 = vmatpush1.bf16.msra.mxu0 0
        %1031 = vmatprep.subr.bf16.mxu0 0
        %1032 = vmatpush1.bf16.msra.mxu0 0
        %1033 = vmatprep.mubr.bf16.mxu0 0
        %1034 = vmatmul.mubr.bf16.gmra.mrb[0].mxu0 %v929
        %v1035 = vpop.f32.mrb[0].mxu0
        %v1036 = vadd.f32 %v951, %v1035
        %v1037 = vpop.f32.mrb[0].mxu0
        %v1038 = vpop.f32.mrb[0].mxu0
        %v1039 = vadd.f32 %v951, %v1038
        %v1040 = vpop.f32.mrb[0].mxu0
        %1041 = vdwg.mxu0
        %1042 = vst [vmem:[%s483] sm:$0xff] %v1036
        %1043 = vst [vmem:[%s483 + $0x8] sm:$0xff] %v1039
        %s1044 = sand.u32 %s275, 1
        %s1045 = scalar_lea.sflag [#allocation4], %s1044
        %s1046 = sand.u32 %s275, 1
        %s1047 = smul.addr %s1046, 16
        %s1048 = scalar_lea.vmem [#allocation13], %s1047
        // Predicated region
        $region89: #{tpu_custom_call.1} parent=63 // pred_check
          %p1049 = pneg %p285
        $region90: #{tpu_custom_call.1} parent=63 // pred_check_branch
          %1051 = sbr.rel (%p1049) target = $region92
        $region91: #{tpu_custom_call.1} parent=63 // pred_region
          %s1052 = smul.u32 2, %s31
          %s1053 = ssub.s32 3, %s1052
          %p1054 = scmp.lt.s32.totalorder %s1053, 2
          %s1055 = scalar_select %p1054, %s1053, 2
          %s1056 = smul.u32 128, %s1055
          %s1058 = ssub.s32 256, %s1056
          %1059 = vsyncadd %s1045, %s1058
          %p1060 = scmp.ne.s32.totalorder 0, %s1056
          %s1061 = smul.addr %s1052, 128
          %s1062 = scalar_lea.hbm %s11, %s1061
          %s1063 = smul.u32 8, %s1055
          %s1064 = sshll.u32 %s1048, 4
          %s1065 = int_to_ptr.vmem [resolvable:$true] %s1064
          %s1066 = sshll.u32 %s1063, 4
          %1070 = dma.vmem_to_hbm [thread:$0]  (%p1060), %s1065, %s1066, %s1062, %s1045, 128, 128, 8
        $region92: #{tpu_custom_call.1} parent=63 // pred_fallthru
          _
      $region64: #{tpu_custom_call.1} parent=5 // pred_fallthru
        _
      %p1071 = scmp.le.s32.totalorder 2, %s26
      // Predicated region
      $region93: #{tpu_custom_call.1} parent=5 // pred_check
        %p1072 = pneg %p1071
      $region94: #{tpu_custom_call.1} parent=5 // pred_check_branch
        %1074 = sbr.rel (%p1072) target = $region96
      $region95: #{tpu_custom_call.1} parent=5 // pred_region
        %s1075 = ssub.s32 %s26, 2
        // Predicated region
        $region97: #{tpu_custom_call.1} parent=95 // pred_check
          %p1076 = pneg %p291
        $region98: #{tpu_custom_call.1} parent=95 // pred_check_branch
          %1078 = sbr.rel (%p1076) target = $region100
        $region99: #{tpu_custom_call.1} parent=95 // pred_region
          %s1079 = sand.u32 %s276, 1
          %s1080 = scalar_lea.sflag [#allocation4], %s1079
          %s1081 = sand.u32 %s276, 1
          %s1082 = smul.addr %s1081, 16
          %s1083 = scalar_lea.vmem [#allocation13], %s1082
          %1084 = dma.done %s1080, 256
        $region100: #{tpu_custom_call.1} parent=95 // pred_fallthru
          _
      $region96: #{tpu_custom_call.1} parent=5 // pred_fallthru
        _
    $region6: #{tpu_custom_call.1} parent=1 // loop_footer
      %s30 = sadd.s32 1, %s26
    $region7: #{tpu_custom_call.1} parent=1 // loop_footer_branch
      %25 = sbr.rel target = $region3
    $region8: #{tpu_custom_call.1} parent=1 // loop_exit
      _
    %1085 = vsyncpa [#allocation3], 1
    %s1086 = scalar_lea.sflag [#allocation3], 1
    %1087 = vsyncpa %s1086, 1
    %1088 = vsyncpa [#allocation6], 1
    %1089 = vsyncpa [#allocation9], 1
    %1090 = vsyncpa [#allocation12], 1
    %1091 = vsyncpa [#allocation4], 1
    %s1092 = scalar_lea.sflag [#allocation4], 1
    %1093 = vsyncpa %s1092, 1

</llo_original>
